<compile_context>
chip_gen: v5e
topology: v5e:2x2
jax: 0.10.0
libtpu: 0.0.40
codegen_flags: <defaults>
</compile_context>

<pallas_src>
import jax
import jax.numpy as jnp
from jax.experimental import pallas as pl
from jax.experimental.pallas import tpu as pltpu

# ---- small, module-consistent shapes -------------------------------------
B = 2                 # batch
SEQ = 8               # stands in for 312 (backbone sequence length)
HID = 128             # stands in for 768 (backbone hidden size)
IN_FEAT = 64          # synthetic raw-feature dim fed to the stand-in backbone
NUM_OUTPUTS = 8       # num_outputs
WORD_SEQ_LEN = 10     # word_seq_length (matches the 10*3 reshape in the loss)
WORD_OUTPUTS = 3      # word_outputs
PHONEME_SEQ_LEN = 30  # phoneme_seq_length (matches the 30*1 reshape)
WORD_DIM = WORD_SEQ_LEN * WORD_OUTPUTS          # 30
HEAD_DIM = NUM_OUTPUTS + WORD_DIM + PHONEME_SEQ_LEN   # 68 fused head columns
HEAD_PAD = 128                                  # padded to one lane-dense tile
D = SEQ * HID                                   # flattened feature dim (312*768 analog)
TK = 512                                        # reduction tile over D (real model: 2048+)


# ---------------------------------------------------------------------------
# Kernel 1: stand-in backbone ("l1"). tanh(linear) producing hidden states.
# TODO(synk): the pretrained AutoModel backbone cannot be reproduced; this is a
#             deterministic synthetic encoder with the same output shape.
# ---------------------------------------------------------------------------
def encoder_kernel(x_ref, w_ref, b_ref, o_ref):
    o_ref[...] = jnp.tanh(
        jnp.dot(x_ref[...], w_ref[...], preferred_element_type=jnp.float32)
        + b_ref[...]
    )


def run_encoder(x_flat, w, b):
    # x_flat: (B*SEQ, IN_FEAT) -> (B*SEQ, HID)
    # Activations are tiny versus the head weight stream; a single block is
    # fine at these shapes (tile the M dim in 128-row blocks for real sizes).
    return pl.pallas_call(
        encoder_kernel,
        out_shape=jax.ShapeDtypeStruct((B * SEQ, HID), jnp.float32),
        grid=(1,),
        in_specs=[
            pl.BlockSpec((B * SEQ, IN_FEAT), lambda i: (0, 0)),
            pl.BlockSpec((IN_FEAT, HID), lambda i: (0, 0)),
            pl.BlockSpec((1, HID), lambda i: (0, 0)),
        ],
        out_specs=pl.BlockSpec((B * SEQ, HID), lambda i: (0, 0)),
    )(x_flat, w, b)


# ---------------------------------------------------------------------------
# Kernel 2: fused output heads (l3 + l4 + l5) as one lane-dense GEMM.
#   x:  (B, D) f32 activations (cast to bf16 at the MXU)
#   w:  (D, 128) bf16 fused weight  [cols 0:8 = l3, 8:38 = l4, 38:68 = l5, rest 0]
#   b:  (1, 128) f32 fused bias, folded into the accumulator at k == 0
# One accumulator, one dot per K step, one unmasked (B, 128) store.
# ---------------------------------------------------------------------------
def heads_kernel(x_ref, w_ref, b_ref, o_ref, acc_ref):
    k = pl.program_id(0)

    @pl.when(k == 0)
    def _():
        # Fold fused bias into accumulator init (bias block index is constant,
        # so the DMA happens only once across the grid).
        acc_ref[...] = jnp.broadcast_to(b_ref[...], (B, HEAD_PAD))

    acc_ref[...] += jnp.dot(
        x_ref[...].astype(jnp.bfloat16),
        w_ref[...],
        preferred_element_type=jnp.float32,
    )

    @pl.when(k == pl.num_programs(0) - 1)
    def _():
        o_ref[...] = acc_ref[...]


def run_heads(x2, w_heads, b_heads):
    # x2: (B, D) flattened hidden states, f32
    fused = pl.pallas_call(
        heads_kernel,
        out_shape=jax.ShapeDtypeStruct((B, HEAD_PAD), jnp.float32),
        grid=(D // TK,),   # for real D, pick TK from divisors of D (no remainder)
        in_specs=[
            pl.BlockSpec((B, TK), lambda k: (0, k)),
            pl.BlockSpec((TK, HEAD_PAD), lambda k: (k, 0)),
            pl.BlockSpec((1, HEAD_PAD), lambda k: (0, 0)),
        ],
        out_specs=pl.BlockSpec((B, HEAD_PAD), lambda k: (0, 0)),
        scratch_shapes=[pltpu.VMEM((B, HEAD_PAD), jnp.float32)],
        compiler_params=pltpu.CompilerParams(
            dimension_semantics=("arbitrary",),
            # Explicit scoped-VMEM budget: safe on v5e (16 MiB default) and
            # well within v7x's 64 MiB physical even at TK in the thousands
            # with bf16 double-buffered weight tiles.
            vmem_limit_bytes=32 * 1024 * 1024,
        ),
    )(x2, w_heads, b_heads)

    output = fused[:, :NUM_OUTPUTS]
    word_fc = fused[:, NUM_OUTPUTS:NUM_OUTPUTS + WORD_DIM]
    phoneme_fc = fused[:, NUM_OUTPUTS + WORD_DIM:HEAD_DIM]
    return output, word_fc, phoneme_fc


# ---------------------------------------------------------------------------
# Parameter init (deterministic, synthetic) + model forward
# ---------------------------------------------------------------------------
def init_params(key):
    ks = jax.random.split(key, 8)

    def uni(k, shape, fan_in):
        bound = 1.0 / jnp.sqrt(fan_in)
        return jax.random.uniform(k, shape, jnp.float32, -bound, bound)

    w3 = uni(ks[2], (D, NUM_OUTPUTS), D)
    w4 = uni(ks[4], (D, WORD_DIM), D)
    w5 = uni(ks[6], (D, PHONEME_SEQ_LEN), D)
    b3 = uni(ks[3], (1, NUM_OUTPUTS), D)
    b4 = uni(ks[5], (1, WORD_DIM), D)
    b5 = uni(ks[7], (1, PHONEME_SEQ_LEN), D)

    # Fuse + lane-pad the three heads into one (D, 128) bf16 weight and one
    # (1, 128) f32 bias. Padding columns are zero (ignored at slice time).
    w_heads = jnp.zeros((D, HEAD_PAD), jnp.float32)
    w_heads = w_heads.at[:, :NUM_OUTPUTS].set(w3)
    w_heads = w_heads.at[:, NUM_OUTPUTS:NUM_OUTPUTS + WORD_DIM].set(w4)
    w_heads = w_heads.at[:, NUM_OUTPUTS + WORD_DIM:HEAD_DIM].set(w5)
    w_heads = w_heads.astype(jnp.bfloat16)

    b_heads = jnp.zeros((1, HEAD_PAD), jnp.float32)
    b_heads = b_heads.at[:, :NUM_OUTPUTS].set(b3)
    b_heads = b_heads.at[:, NUM_OUTPUTS:NUM_OUTPUTS + WORD_DIM].set(b4)
    b_heads = b_heads.at[:, NUM_OUTPUTS + WORD_DIM:HEAD_DIM].set(b5)

    return {
        "w_enc": uni(ks[0], (IN_FEAT, HID), IN_FEAT),
        "b_enc": uni(ks[1], (1, HID), IN_FEAT),
        "w_heads": w_heads,   # (D, 128) bf16 fused [l3 | l4 | l5 | pad]
        "b_heads": b_heads,   # (1, 128) f32 fused bias
    }


def speech_model_forward(data, params, one_output=False):
    # data: (B, SEQ, IN_FEAT) synthetic raw features for the stand-in backbone
    hs = run_encoder(data.reshape(B * SEQ, IN_FEAT),
                     params["w_enc"], params["b_enc"])           # (B*SEQ, HID)
    output_2 = hs.reshape(B, SEQ * HID)                          # (B, 312*768 analog)
    # TODO(synk): Dropout(0.3) (l2) omitted — identity in eval/inference mode.
    output, word_fc, phoneme_fc = run_heads(
        output_2, params["w_heads"], params["b_heads"])
    if one_output:
        return (output, 0, 0), None
    return (output,
            word_fc.astype(jnp.float32),
            phoneme_fc.astype(jnp.float32)), None   # loss=None (targets=None)


# ---------------------------------------------------------------------------
if __name__ == "__main__":
    key = jax.random.PRNGKey(0)
    k_data, k_params = jax.random.split(key)
    data = jax.random.normal(k_data, (B, SEQ, IN_FEAT), jnp.float32)
    params = init_params(k_params)

    (output, word_output, phoneme_output), loss = speech_model_forward(data, params)
    jax.block_until_ready((output, word_output, phoneme_output))

    # quick reference check in plain JAX (bf16-faithful: same rounded operands)
    hs_ref = jnp.tanh(data.reshape(B * SEQ, IN_FEAT) @ params["w_enc"] + params["b_enc"])
    x2_ref = hs_ref.reshape(B, D)
    x2_bf = x2_ref.astype(jnp.bfloat16).astype(jnp.float32)
    w_f = params["w_heads"].astype(jnp.float32)
    fused_ref = x2_bf @ w_f + params["b_heads"]
    out_ref = fused_ref[:, :NUM_OUTPUTS]
    word_ref = fused_ref[:, NUM_OUTPUTS:NUM_OUTPUTS + WORD_DIM]
    ph_ref = fused_ref[:, NUM_OUTPUTS + WORD_DIM:HEAD_DIM]

    assert output.shape == (B, NUM_OUTPUTS)
    assert word_output.shape == (B, WORD_DIM)
    assert phoneme_output.shape == (B, PHONEME_SEQ_LEN)
    assert jnp.allclose(output, out_ref, atol=2e-3)
    assert jnp.allclose(word_output, word_ref, atol=2e-3)
    assert jnp.allclose(phoneme_output, ph_ref, atol=2e-3)
    assert loss is None

    print("KERNEL_OK")
</pallas_src>

<mosaic_0001>
module attributes {stable_mosaic.version = 11 : i64} {
  func.func @encoder_kernel(%arg0: i32, %arg1: memref<16x64xf32, #tpu.memory_space<vmem>>, %arg2: memref<64x128xf32, #tpu.memory_space<vmem>>, %arg3: memref<1x128xf32, #tpu.memory_space<vmem>>, %arg4: memref<16x128xf32, #tpu.memory_space<vmem>>) attributes {dimension_semantics = [#tpu.dimension_semantics<arbitrary>], iteration_bounds = array<i64: 1>, scalar_prefetch = 0 : i64, scratch_operands = 0 : i64, tpu.core_type = #tpu.core_type<tc>, window_params = [{pipeline_mode = #tpu.pipeline_mode<synchronous>, transform_indices = @transform_0, window_bounds = array<i64: 16, 64>}, {pipeline_mode = #tpu.pipeline_mode<synchronous>, transform_indices = @transform_1, window_bounds = array<i64: 64, 128>}, {pipeline_mode = #tpu.pipeline_mode<synchronous>, transform_indices = @transform_2, window_bounds = array<i64: 1, 128>}, {pipeline_mode = #tpu.pipeline_mode<synchronous>, transform_indices = @transform_3, window_bounds = array<i64: 16, 128>}]} {
    %c0 = arith.constant 0 : index
    %c0_0 = arith.constant 0 : index
    %0 = vector.load %arg1[%c0, %c0_0] : memref<16x64xf32, #tpu.memory_space<vmem>>, vector<16x64xf32>
    %c0_1 = arith.constant 0 : index
    %c0_2 = arith.constant 0 : index
    %1 = vector.load %arg2[%c0_1, %c0_2] : memref<64x128xf32, #tpu.memory_space<vmem>>, vector<64x128xf32>
    %cst = arith.constant dense<0.000000e+00> : vector<16x128xf32>
    %2 = tpu.matmul %0, %1, %cst {dimension_numbers = #tpu.dot_dimension_numbers<[1], [0], [0], [1], [0, 0, 1, 1], [], []>} : vector<16x64xf32>, vector<64x128xf32>, vector<16x128xf32> -> vector<16x128xf32>
    %c0_3 = arith.constant 0 : index
    %c0_4 = arith.constant 0 : index
    %3 = vector.load %arg3[%c0_3, %c0_4] : memref<1x128xf32, #tpu.memory_space<vmem>>, vector<1x128xf32>
    %4 = vector.broadcast %3 : vector<1x128xf32> to vector<16x128xf32>
    %5 = arith.addf %2, %4 : vector<16x128xf32>
    %6 = math.tanh %5 : vector<16x128xf32>
    %c0_5 = arith.constant 0 : index
    %c0_6 = arith.constant 0 : index
    %7 = vector.load %arg4[%c0_5, %c0_6] : memref<16x128xf32, #tpu.memory_space<vmem>>, vector<16x128xf32>
    tpu.vector_store %arg4[%c0_5, %c0_6], %6 {strides = array<i32>} : memref<16x128xf32, #tpu.memory_space<vmem>>, vector<16x128xf32>,
    return
  }
  func.func @transform_0(%arg0: i32) -> (i32, i32) {
    %c0_i32 = arith.constant 0 : i32
    %c0_i32_0 = arith.constant 0 : i32
    %c0_i32_1 = arith.constant 0 : i32
    return %c0_i32, %c0_i32_0 : i32, i32
  }
  func.func @transform_1(%arg0: i32) -> (i32, i32) {
    %c0_i32 = arith.constant 0 : i32
    %c0_i32_0 = arith.constant 0 : i32
    %c0_i32_1 = arith.constant 0 : i32
    return %c0_i32, %c0_i32_0 : i32, i32
  }
  func.func @transform_2(%arg0: i32) -> (i32, i32) {
    %c0_i32 = arith.constant 0 : i32
    %c0_i32_0 = arith.constant 0 : i32
    %c0_i32_1 = arith.constant 0 : i32
    return %c0_i32, %c0_i32_0 : i32, i32
  }
  func.func @transform_3(%arg0: i32) -> (i32, i32) {
    %c0_i32 = arith.constant 0 : i32
    %c0_i32_0 = arith.constant 0 : i32
    %c0_i32_1 = arith.constant 0 : i32
    return %c0_i32, %c0_i32_0 : i32, i32
  }
}

</mosaic_0001>

<llo_original>
// kernel: tpu_custom_call.1
$region0: #{tpu_custom_call.1}
  #allocation0 [shape = 'u32[]', space=smem, size = 0x4, offset = 0x4, fixed_abs, tag = 'smem constant byte address 0x4 - core index']
  #allocation1 [shape = 'u32[72,128]{1,0:T(1,128)}', space=vmem, size = 0x9000, scoped, tag = 'internal scratch']
  %s0 = inlined_call_operand.hbm [shape: f32[16,64], index: 0, kind: input, shape index: {}]
  %s1 = inlined_call_operand.hbm [shape: f32[64,128], index: 1, kind: input, shape index: {}]
  %s2 = inlined_call_operand.vmem [shape: f32[1,128], index: 2, kind: input, shape index: {}]
  %s3 = inlined_call_operand.hbm [shape: f32[16,128], index: 3, kind: output, shape index: {}]
  %s4 = sld [smem:[#allocation0]]
  $region30: #{tpu_custom_call.1} parent=0
    _
  %s6 = ssub.s32 1, %s4
  %s7 = scalar_select 0, %s6, %s4
  $region1: #{tpu_custom_call.1} parent=0
    #allocation2 [shape = 'u8[8192]{0}', space=vmem, size = 0x2000, scoped, tag = 'input window, operand 0, single buffered']
    #allocation3 [shape = 's32[1]{0}', space=sflag, size = 0x4, scoped, tag = 'scoped memory for tpu_custom_call.1']
    #allocation4 [shape = 's32[1]{0}', space=sflag, size = 0x4, scoped, tag = 'scoped memory for tpu_custom_call.1']
    #allocation5 [shape = 'u8[32768]{0}', space=vmem, size = 0x8000, scoped, tag = 'input window, operand 1, single buffered']
    #allocation6 [shape = 's32[1]{0}', space=sflag, size = 0x4, scoped, tag = 'scoped memory for tpu_custom_call.1']
    #allocation7 [shape = 'u8[8192]{0}', space=vmem, size = 0x2000, scoped, tag = 'output window, operand 0, single buffered']
    %8 = vsyncpa [#allocation3], 0
    %9 = vsyncpa [#allocation6], 0
    %10 = vsyncpa [#allocation4], 0
    // Predicated region
    $region2: #{tpu_custom_call.1} parent=1 // pred_check
      _
    $region3: #{tpu_custom_call.1} parent=1 // pred_check_branch
      %12 = sbr.rel (0) target = $region5
    $region4: #{tpu_custom_call.1} parent=1 // pred_region
      %14 = vsyncadd [#allocation3], 0
      %s15 = sshll.u32 %s0, 4
      %s16 = int_to_ptr.hbm [resolvable:$true] %s15
      %s17 = sshll.u32 [#allocation2], 4
      %s18 = int_to_ptr.vmem [resolvable:$true] %s17
      %23 = dma.hbm_to_vmem [thread:$0]  %s16, 256, %s18, [#allocation3], 128, 128, 8
    $region5: #{tpu_custom_call.1} parent=1 // pred_fallthru
      _
    // Predicated region
    $region6: #{tpu_custom_call.1} parent=1 // pred_check
      _
    $region7: #{tpu_custom_call.1} parent=1 // pred_check_branch
      %25 = sbr.rel (0) target = $region9
    $region8: #{tpu_custom_call.1} parent=1 // pred_region
      %27 = vsyncadd [#allocation6], 0
      %s28 = sshll.u32 %s1, 4
      %s29 = int_to_ptr.hbm [resolvable:$true] %s28
      %s30 = sshll.u32 [#allocation5], 4
      %s31 = int_to_ptr.vmem [resolvable:$true] %s30
      %36 = dma.hbm_to_vmem [thread:$0]  %s29, 1024, %s31, [#allocation6], 128, 128, 8
    $region9: #{tpu_custom_call.1} parent=1 // pred_fallthru
      _
    // Predicated region
    $region10: #{tpu_custom_call.1} parent=1 // pred_check
      _
    $region11: #{tpu_custom_call.1} parent=1 // pred_check_branch
      %38 = sbr.rel (0) target = $region13
    $region12: #{tpu_custom_call.1} parent=1 // pred_region
      _
    $region13: #{tpu_custom_call.1} parent=1 // pred_fallthru
      _
    // Predicated region
    $region14: #{tpu_custom_call.1} parent=1 // pred_check
      _
    $region15: #{tpu_custom_call.1} parent=1 // pred_check_branch
      %40 = sbr.rel (0) target = $region17
    $region16: #{tpu_custom_call.1} parent=1 // pred_region
      %42 = dma.done [#allocation3], 256
    $region17: #{tpu_custom_call.1} parent=1 // pred_fallthru
      _
    // Predicated region
    $region18: #{tpu_custom_call.1} parent=1 // pred_check
      _
    $region19: #{tpu_custom_call.1} parent=1 // pred_check_branch
      %44 = sbr.rel (0) target = $region21
    $region20: #{tpu_custom_call.1} parent=1 // pred_region
      %46 = dma.done [#allocation6], 1024
    $region21: #{tpu_custom_call.1} parent=1 // pred_fallthru
      _
    %v47 = vld [vmem:[#allocation2] sm:$0xff]
    %v48 = vld [vmem:[#allocation2 + $0x8] sm:$0xff]
    %v49 = vld [vmem:[#allocation5] sm:$0xff]
    %v50 = vld [vmem:[#allocation5 + $0x8] sm:$0xff]
    %v51 = vld [vmem:[#allocation5 + $0x10] sm:$0xff]
    %v52 = vld [vmem:[#allocation5 + $0x18] sm:$0xff]
    %v53 = vld [vmem:[#allocation5 + $0x20] sm:$0xff]
    %v54 = vld [vmem:[#allocation5 + $0x28] sm:$0xff]
    %v55 = vld [vmem:[#allocation5 + $0x30] sm:$0xff]
    %v56 = vld [vmem:[#allocation5 + $0x38] sm:$0xff]
    %v57 = vld [vmem:[%s2] sm:$0x1]
    %v59 = vperm.slane %v57, 0
    %vm61 = vcmask 523264
    %v63 = vsel %vm61, %v47, 0
    %v66 = vsel %vm61, %v48, 0
    %68 = vmatpush.msra.mxu0 0.0
    %69 = vmatpush.msra.mxu0 0.0
    %70 = vmatpush.msra.mxu0 0.0
    %71 = vmatpush.msra.mxu0 0.0
    %72 = vmatpush.msra.mxu0 0.0
    %73 = vmatpush.msra.mxu0 0.0
    %74 = vmatpush.msra.mxu0 0.0
    %75 = vmatpush.msra.mxu0 0.0
    %76 = vmatpush.msra.mxu0 %v56
    %77 = vmatpush.msra.mxu0 %v55
    %78 = vmatpush.msra.mxu0 %v54
    %79 = vmatpush.msra.mxu0 %v53
    %80 = vmatpush.msra.mxu0 %v52
    %81 = vmatpush.msra.mxu0 %v51
    %82 = vmatpush.msra.mxu0 %v50
    %83 = vmatpush.msra.mxu0 %v49
    %84 = vmatmul.f32.gmra.mxu0 %v63
    %v85 = vpop.f32.mrf.mxu0
    %v86 = vadd.f32 %v59, %v85
    %87 = vmatmul.f32.gmra.mxu0 %v66
    %v88 = vpop.f32.mrf.mxu0
    %v89 = vadd.f32 %v59, %v88
    %90 = vdwg.mxu0
    %v91 = vtanh.pop %v86
    %v92 = vtanh.pop %v89
    %93 = vst [vmem:[#allocation7] sm:$0xff] %v91
    %94 = vst [vmem:[#allocation7 + $0x8] sm:$0xff] %v92
    // Predicated region
    $region22: #{tpu_custom_call.1} parent=1 // pred_check
      _
    $region23: #{tpu_custom_call.1} parent=1 // pred_check_branch
      %96 = sbr.rel (0) target = $region25
    $region24: #{tpu_custom_call.1} parent=1 // pred_region
      %98 = vsyncadd [#allocation4], 0
      %s99 = sshll.u32 [#allocation7], 4
      %s100 = int_to_ptr.vmem [resolvable:$true] %s99
      %s101 = sshll.u32 %s3, 4
      %s102 = int_to_ptr.hbm [resolvable:$true] %s101
      %107 = dma.vmem_to_hbm [thread:$0]  %s100, 256, %s102, [#allocation4], 128, 128, 8
    $region25: #{tpu_custom_call.1} parent=1 // pred_fallthru
      _
    // Predicated region
    $region26: #{tpu_custom_call.1} parent=1 // pred_check
      _
    $region27: #{tpu_custom_call.1} parent=1 // pred_check_branch
      %109 = sbr.rel (0) target = $region29
    $region28: #{tpu_custom_call.1} parent=1 // pred_region
      %111 = dma.done [#allocation4], 256
    $region29: #{tpu_custom_call.1} parent=1 // pred_fallthru
      _
    %112 = vsyncpa [#allocation3], 1
    %113 = vsyncpa [#allocation6], 1
    %114 = vsyncpa [#allocation4], 1

</llo_original>
